<compile_context>
chip_gen: v7x
topology: tpu7x:2x2x1
jax: 0.10.0
libtpu: 0.0.40
codegen_flags: <defaults>
</compile_context>

<pallas_src>
import jax
import jax.numpy as jnp
from jax import lax
from jax.experimental import pallas as pl
from jax.experimental.pallas import tpu as pltpu

B = 2            # batch
C = 8            # conv1 output channels
KD = 25          # im2col patch dim = 1 * 5 * 5
S = 4            # pooled spatial positions (2x2)
NCLS = 10        # classes
NROWS = 4 * S * B   # 4 pool candidates * 4 positions * B = 32 patch rows


def mnist_kernel(patches_ref, w1_ref, bias_ref, w2_ref, b2_ref, out_ref):
    # patches: (32, 25) rows ordered (dh, dw, ph, pw, b), channels end up on lanes
    # w1: (25, 8)   bias: (1, 8)  (conv bias + LearnableBias folded)
    # w2: (4, 8, 10) indexed [pool_pos, c_in, class]   b2: (1, 10)
    conv = jnp.dot(patches_ref[...], w1_ref[...],
                   preferred_element_type=jnp.float32)              # (32, 8) conv1
    conv = jnp.maximum(conv + bias_ref[...], 0.0)                   # +bias +move, ReLU

    # F.max_pool2d(x, 2): the 4 (dh, dw) candidates are contiguous (8, 8) blocks,
    # so the pool is 3 full-block VPU maxes.
    R = S * B                                                       # 8 rows per block
    pooled = jnp.maximum(
        jnp.maximum(conv[0 * R:1 * R], conv[1 * R:2 * R]),
        jnp.maximum(conv[2 * R:3 * R], conv[3 * R:4 * R]))          # (8, 8), rows (s, b)

    # fc1: torch.flatten + fc weight permutation folded into w2_ref; contract over
    # pool position s with 4 tiny MXU dots (static unroll), no lane reshuffle.
    logits = b2_ref[...]                                            # (1,10) -> broadcasts
    for s in range(S):
        logits = logits + jnp.dot(pooled[s * B:(s + 1) * B, :], w2_ref[s],
                                  preferred_element_type=jnp.float32)   # (B, 10)

    # log_softmax along dim=1 (numerically stable)
    mx = jnp.max(logits, axis=-1, keepdims=True)
    sh = logits - mx
    lse = jnp.log(jnp.sum(jnp.exp(sh), axis=-1, keepdims=True))
    out_ref[...] = sh - lse


def extract_patches(x):
    # x: (B, 1, 28, 28) NCHW.  Conv1 has kernel == stride == 5 (no pad), and the 2x2
    # maxpool only consumes conv positions 0..3, i.e. the top-left 20x20 pixels.
    xb = x[:, 0, :20, :20]                        # (B, 20, 20)
    p = xb.reshape(B, 2, 2, 5, 2, 2, 5)           # (b, ph, dh, kh, pw, dw, kw)
    p = p.transpose(2, 5, 1, 4, 0, 3, 6)          # (dh, dw, ph, pw, b, kh, kw)
    return p.reshape(NROWS, KD)                   # (32, 25)
    # NOTE: with pltpu.CompilerParams(allow_input_fusion=[0]) this could be fused
    # into the pallas operand to skip the HBM round trip; kept separate for safety.


def prepare_params(params):
    # One-time host-side parameter prep (hoisted out of the per-call path).
    w1 = params["conv_w"].reshape(C, KD).T.astype(jnp.float32)          # (25, 8)
    bias = (params["conv_b"] + params["move_b"]).reshape(1, C).astype(jnp.float32)
    # torch.flatten of (B, 8, 2, 2) uses index c*4 + s  ->  stack weights as [s, c, o]
    w2 = params["fc_w"].reshape(NCLS, C, S).transpose(2, 1, 0).astype(jnp.float32)  # (4, 8, 10)
    b2 = params["fc_b"].reshape(1, NCLS).astype(jnp.float32)
    return {"w1": w1, "bias": bias, "w2": w2, "b2": b2}


@jax.jit
def mnist_forward(x, prep):
    patches = extract_patches(x.astype(jnp.float32))
    vmem = lambda: pl.BlockSpec(memory_space=pltpu.MemorySpace.VMEM)
    out = pl.pallas_call(
        mnist_kernel,
        out_shape=jax.ShapeDtypeStruct((B, NCLS), jnp.float32),
        in_specs=[vmem() for _ in range(5)],
        out_specs=vmem(),
    )(patches, prep["w1"], prep["bias"], prep["w2"], prep["b2"])
    return {"preds": out}


def mnist_reference(x, params):
    # Pure-JAX reference mirroring the PyTorch forward.
    w1, b1 = params["conv_w"], params["conv_b"]
    mv = params["move_b"]
    w2, b2 = params["fc_w"], params["fc_b"]
    y = lax.conv_general_dilated(x, w1, window_strides=(5, 5), padding="VALID",
                                 dimension_numbers=("NCHW", "OIHW", "NCHW"))
    y = y + b1.reshape(1, C, 1, 1)
    y = y + mv.reshape(1, C, 1, 1)
    y = jnp.maximum(y, 0.0)
    y = lax.reduce_window(y, -jnp.inf, lax.max, (1, 1, 2, 2), (1, 1, 2, 2), "VALID")
    y = y.reshape(B, -1)                          # torch.flatten(x, 1): (B, 8*2*2)
    y = y @ w2.T + b2
    return jax.nn.log_softmax(y, axis=1)


if __name__ == "__main__":
    key = jax.random.PRNGKey(0)
    ks = jax.random.split(key, 6)
    params = {
        "conv_w": jax.random.normal(ks[0], (C, 1, 5, 5), jnp.float32) * 0.2,
        "conv_b": jax.random.normal(ks[1], (C,), jnp.float32) * 0.1,
        "move_b": jax.random.normal(ks[2], (C,), jnp.float32) * 0.1,
        "fc_w":   jax.random.normal(ks[3], (NCLS, C * S), jnp.float32) * 0.1,
        "fc_b":   jax.random.normal(ks[4], (NCLS,), jnp.float32) * 0.1,
    }
    x = jax.random.normal(ks[5], (B, 1, 28, 28), jnp.float32)

    prep = prepare_params(params)                 # one-time prep, outside per-call path
    out = mnist_forward(x, prep)["preds"]
    jax.block_until_ready(out)

    ref = mnist_reference(x, params)
    assert out.shape == (B, NCLS)
    assert jnp.allclose(out, ref, atol=1e-5, rtol=1e-5), (out, ref)
    print("KERNEL_OK")
</pallas_src>

<mosaic_0001>
module attributes {stable_mosaic.version = 11 : i64} {
  func.func @mnist_kernel(%arg0: memref<32x25xf32, #tpu.memory_space<vmem>>, %arg1: memref<25x8xf32, #tpu.memory_space<vmem>>, %arg2: memref<1x8xf32, #tpu.memory_space<vmem>>, %arg3: memref<4x8x10xf32, #tpu.memory_space<vmem>>, %arg4: memref<1x10xf32, #tpu.memory_space<vmem>>, %arg5: memref<2x10xf32, #tpu.memory_space<vmem>>) attributes {dimension_semantics = [], scalar_prefetch = 0 : i64, scratch_operands = 0 : i64, tpu.core_type = #tpu.core_type<tc>} {
    %c0 = arith.constant 0 : index
    %c0_0 = arith.constant 0 : index
    %0 = vector.load %arg0[%c0, %c0_0] : memref<32x25xf32, #tpu.memory_space<vmem>>, vector<32x25xf32>
    %c0_1 = arith.constant 0 : index
    %c0_2 = arith.constant 0 : index
    %1 = vector.load %arg1[%c0_1, %c0_2] : memref<25x8xf32, #tpu.memory_space<vmem>>, vector<25x8xf32>
    %cst = arith.constant dense<0.000000e+00> : vector<32x8xf32>
    %2 = tpu.matmul %0, %1, %cst {dimension_numbers = #tpu.dot_dimension_numbers<[1], [0], [0], [1], [0, 0, 1, 1], [], []>} : vector<32x25xf32>, vector<25x8xf32>, vector<32x8xf32> -> vector<32x8xf32>
    %c0_3 = arith.constant 0 : index
    %c0_4 = arith.constant 0 : index
    %3 = vector.load %arg2[%c0_3, %c0_4] : memref<1x8xf32, #tpu.memory_space<vmem>>, vector<1x8xf32>
    %4 = vector.broadcast %3 : vector<1x8xf32> to vector<32x8xf32>
    %5 = arith.addf %2, %4 : vector<32x8xf32>
    %cst_5 = arith.constant 0.000000e+00 : f32
    %6 = vector.broadcast %cst_5 : f32 to vector<32x8xf32>
    %7 = arith.maximumf %5, %6 : vector<32x8xf32>
    %8 = vector.extract_strided_slice %7 {offsets = [0, 0], sizes = [8, 8], strides = [1, 1]} : vector<32x8xf32> to vector<8x8xf32>
    %9 = vector.extract_strided_slice %7 {offsets = [8, 0], sizes = [8, 8], strides = [1, 1]} : vector<32x8xf32> to vector<8x8xf32>
    %10 = arith.maximumf %8, %9 : vector<8x8xf32>
    %11 = vector.extract_strided_slice %7 {offsets = [16, 0], sizes = [8, 8], strides = [1, 1]} : vector<32x8xf32> to vector<8x8xf32>
    %12 = vector.extract_strided_slice %7 {offsets = [24, 0], sizes = [8, 8], strides = [1, 1]} : vector<32x8xf32> to vector<8x8xf32>
    %13 = arith.maximumf %11, %12 : vector<8x8xf32>
    %14 = arith.maximumf %10, %13 : vector<8x8xf32>
    %c0_6 = arith.constant 0 : index
    %c0_7 = arith.constant 0 : index
    %15 = vector.load %arg4[%c0_6, %c0_7] : memref<1x10xf32, #tpu.memory_space<vmem>>, vector<1x10xf32>
    %16 = vector.extract_strided_slice %14 {offsets = [0, 0], sizes = [2, 8], strides = [1, 1]} : vector<8x8xf32> to vector<2x8xf32>
    %c0_8 = arith.constant 0 : index
    %c0_9 = arith.constant 0 : index
    %c0_10 = arith.constant 0 : index
    %17 = vector.load %arg3[%c0_8, %c0_9, %c0_10] : memref<4x8x10xf32, #tpu.memory_space<vmem>>, vector<1x8x10xf32>
    %18 = vector.shape_cast %17 : vector<1x8x10xf32> to vector<8x10xf32>
    %cst_11 = arith.constant dense<0.000000e+00> : vector<2x10xf32>
    %19 = tpu.matmul %16, %18, %cst_11 {dimension_numbers = #tpu.dot_dimension_numbers<[1], [0], [0], [1], [0, 0, 1, 1], [], []>} : vector<2x8xf32>, vector<8x10xf32>, vector<2x10xf32> -> vector<2x10xf32>
    %20 = vector.broadcast %15 : vector<1x10xf32> to vector<2x10xf32>
    %21 = arith.addf %20, %19 : vector<2x10xf32>
    %22 = vector.extract_strided_slice %14 {offsets = [2, 0], sizes = [2, 8], strides = [1, 1]} : vector<8x8xf32> to vector<2x8xf32>
    %c1 = arith.constant 1 : index
    %c0_12 = arith.constant 0 : index
    %c0_13 = arith.constant 0 : index
    %23 = vector.load %arg3[%c1, %c0_12, %c0_13] : memref<4x8x10xf32, #tpu.memory_space<vmem>>, vector<1x8x10xf32>
    %24 = vector.shape_cast %23 : vector<1x8x10xf32> to vector<8x10xf32>
    %cst_14 = arith.constant dense<0.000000e+00> : vector<2x10xf32>
    %25 = tpu.matmul %22, %24, %cst_14 {dimension_numbers = #tpu.dot_dimension_numbers<[1], [0], [0], [1], [0, 0, 1, 1], [], []>} : vector<2x8xf32>, vector<8x10xf32>, vector<2x10xf32> -> vector<2x10xf32>
    %26 = arith.addf %21, %25 : vector<2x10xf32>
    %27 = vector.extract_strided_slice %14 {offsets = [4, 0], sizes = [2, 8], strides = [1, 1]} : vector<8x8xf32> to vector<2x8xf32>
    %c2 = arith.constant 2 : index
    %c0_15 = arith.constant 0 : index
    %c0_16 = arith.constant 0 : index
    %28 = vector.load %arg3[%c2, %c0_15, %c0_16] : memref<4x8x10xf32, #tpu.memory_space<vmem>>, vector<1x8x10xf32>
    %29 = vector.shape_cast %28 : vector<1x8x10xf32> to vector<8x10xf32>
    %cst_17 = arith.constant dense<0.000000e+00> : vector<2x10xf32>
    %30 = tpu.matmul %27, %29, %cst_17 {dimension_numbers = #tpu.dot_dimension_numbers<[1], [0], [0], [1], [0, 0, 1, 1], [], []>} : vector<2x8xf32>, vector<8x10xf32>, vector<2x10xf32> -> vector<2x10xf32>
    %31 = arith.addf %26, %30 : vector<2x10xf32>
    %32 = vector.extract_strided_slice %14 {offsets = [6, 0], sizes = [2, 8], strides = [1, 1]} : vector<8x8xf32> to vector<2x8xf32>
    %c3 = arith.constant 3 : index
    %c0_18 = arith.constant 0 : index
    %c0_19 = arith.constant 0 : index
    %33 = vector.load %arg3[%c3, %c0_18, %c0_19] : memref<4x8x10xf32, #tpu.memory_space<vmem>>, vector<1x8x10xf32>
    %34 = vector.shape_cast %33 : vector<1x8x10xf32> to vector<8x10xf32>
    %cst_20 = arith.constant dense<0.000000e+00> : vector<2x10xf32>
    %35 = tpu.matmul %32, %34, %cst_20 {dimension_numbers = #tpu.dot_dimension_numbers<[1], [0], [0], [1], [0, 0, 1, 1], [], []>} : vector<2x8xf32>, vector<8x10xf32>, vector<2x10xf32> -> vector<2x10xf32>
    %36 = arith.addf %31, %35 : vector<2x10xf32>
    %cst_21 = arith.constant dense<0xFF800000> : vector<2xf32>
    %37 = vector.multi_reduction <maximumf>, %36, %cst_21 [1] : vector<2x10xf32> to vector<2xf32>
    %38 = vector.shape_cast %37 : vector<2xf32> to vector<2x1xf32>
    %39 = vector.broadcast %38 : vector<2x1xf32> to vector<2x10xf32>
    %40 = arith.subf %36, %39 : vector<2x10xf32>
    %41 = math.exp %40 : vector<2x10xf32>
    %cst_22 = arith.constant dense<0.000000e+00> : vector<2xf32>
    %42 = vector.multi_reduction <add>, %41, %cst_22 [1] : vector<2x10xf32> to vector<2xf32>
    %43 = vector.shape_cast %42 : vector<2xf32> to vector<2x1xf32>
    %44 = math.log %43 : vector<2x1xf32>
    %45 = vector.broadcast %44 : vector<2x1xf32> to vector<2x10xf32>
    %46 = arith.subf %40, %45 : vector<2x10xf32>
    %c0_23 = arith.constant 0 : index
    %c0_24 = arith.constant 0 : index
    %47 = vector.load %arg5[%c0_23, %c0_24] : memref<2x10xf32, #tpu.memory_space<vmem>>, vector<2x10xf32>
    tpu.vector_store %arg5[%c0_23, %c0_24], %46 {strides = array<i32>} : memref<2x10xf32, #tpu.memory_space<vmem>>, vector<2x10xf32>,
    return
  }
}

</mosaic_0001>

<llo_original>
// kernel: squeeze.1
$region0: #{squeeze.1}
  %s0 = inlined_call_operand.vmem [shape: f32[2,20,20], index: 0, kind: input, shape index: {}]
  %s1 = inlined_call_operand.vmem [shape: f32[2,2,2,5,2,2,5], index: 1, kind: output, shape index: {}]
  $region1: #{squeeze.1} parent=0
    #allocation0 [shape = 'u8[327680]{0}', space=vmem, size = 0x50000, scoped, tag = 'scoped mem for output reshape']
    %v2 = vld [vmem:[%s0] sm:$0xff]
    %vm3 = vcmask 39936
    %4 = vst.msk [vmem:[#allocation0] ss:$16 sm:$0x3] %vm3, %v2
    %5 = vst.msk [vmem:[#allocation0] ss:$16 sm:$0xc] %vm3, %v2
    %6 = vst.msk [vmem:[#allocation0] ss:$16 sm:$0x30] %vm3, %v2
    %7 = vst.msk [vmem:[#allocation0] ss:$16 sm:$0xc0] %vm3, %v2
    %s8 = scalar_lea.vmem %s0, 8
    %v9 = vld [vmem:[%s8] sm:$0xff]
    %vm10 = vcmask 39936
    %s11 = scalar_lea.vmem [#allocation0], 128
    %12 = vst.msk [vmem:[%s11] ss:$16 sm:$0x3] %vm10, %v9
    %s13 = scalar_lea.vmem [#allocation0], 128
    %14 = vst.msk [vmem:[%s13] ss:$16 sm:$0xc] %vm10, %v9
    %s15 = scalar_lea.vmem [#allocation0], 128
    %16 = vst.msk [vmem:[%s15] ss:$16 sm:$0x30] %vm10, %v9
    %s17 = scalar_lea.vmem [#allocation0], 128
    %18 = vst.msk [vmem:[%s17] ss:$16 sm:$0xc0] %vm10, %v9
    %s19 = scalar_lea.vmem %s0, 16
    %v20 = vld [vmem:[%s19] sm:$0xf]
    %vm21 = vcmask 39936
    %s22 = scalar_lea.vmem [#allocation0], 256
    %23 = vst.msk [vmem:[%s22] ss:$16 sm:$0x3] %vm21, %v20
    %s24 = scalar_lea.vmem [#allocation0], 256
    %25 = vst.msk [vmem:[%s24] ss:$16 sm:$0xc] %vm21, %v20
    %s26 = scalar_lea.vmem %s0, 24
    %v27 = vld [vmem:[%s26] sm:$0xff]
    %vm28 = vcmask 39936
    %s29 = scalar_lea.vmem [#allocation0], 320
    %30 = vst.msk [vmem:[%s29] ss:$16 sm:$0x3] %vm28, %v27
    %s31 = scalar_lea.vmem [#allocation0], 320
    %32 = vst.msk [vmem:[%s31] ss:$16 sm:$0xc] %vm28, %v27
    %s33 = scalar_lea.vmem [#allocation0], 320
    %34 = vst.msk [vmem:[%s33] ss:$16 sm:$0x30] %vm28, %v27
    %s35 = scalar_lea.vmem [#allocation0], 320
    %36 = vst.msk [vmem:[%s35] ss:$16 sm:$0xc0] %vm28, %v27
    %s37 = scalar_lea.vmem %s0, 32
    %v38 = vld [vmem:[%s37] sm:$0xff]
    %vm39 = vcmask 39936
    %s40 = scalar_lea.vmem [#allocation0], 448
    %41 = vst.msk [vmem:[%s40] ss:$16 sm:$0x3] %vm39, %v38
    %s42 = scalar_lea.vmem [#allocation0], 448
    %43 = vst.msk [vmem:[%s42] ss:$16 sm:$0xc] %vm39, %v38
    %s44 = scalar_lea.vmem [#allocation0], 448
    %45 = vst.msk [vmem:[%s44] ss:$16 sm:$0x30] %vm39, %v38
    %s46 = scalar_lea.vmem [#allocation0], 448
    %47 = vst.msk [vmem:[%s46] ss:$16 sm:$0xc0] %vm39, %v38
    %s48 = scalar_lea.vmem %s0, 40
    %v49 = vld [vmem:[%s48] sm:$0xf]
    %vm50 = vcmask 39936
    %s51 = scalar_lea.vmem [#allocation0], 576
    %52 = vst.msk [vmem:[%s51] ss:$16 sm:$0x3] %vm50, %v49
    %s53 = scalar_lea.vmem [#allocation0], 576
    %54 = vst.msk [vmem:[%s53] ss:$16 sm:$0xc] %vm50, %v49
    %v55 = vld [vmem:[%s0] sm:$0xff]
    %56 = vrot.lane.b32.xlu0 %v55, 123
    %v57 = vpop.permute.xlu0 %56
    %vm58 = vcmask 39936
    %s59 = scalar_lea.vmem [#allocation0], 1
    %60 = vst.msk [vmem:[%s59] ss:$16 sm:$0x3] %vm58, %v57
    %s61 = scalar_lea.vmem [#allocation0], 1
    %62 = vst.msk [vmem:[%s61] ss:$16 sm:$0xc] %vm58, %v57
    %s63 = scalar_lea.vmem [#allocation0], 1
    %64 = vst.msk [vmem:[%s63] ss:$16 sm:$0x30] %vm58, %v57
    %s65 = scalar_lea.vmem [#allocation0], 1
    %66 = vst.msk [vmem:[%s65] ss:$16 sm:$0xc0] %vm58, %v57
    %s67 = scalar_lea.vmem %s0, 8
    %v68 = vld [vmem:[%s67] sm:$0xff]
    %69 = vrot.lane.b32.xlu0 %v68, 123
    %v70 = vpop.permute.xlu0 %69
    %vm71 = vcmask 39936
    %s72 = scalar_lea.vmem [#allocation0], 129
    %73 = vst.msk [vmem:[%s72] ss:$16 sm:$0x3] %vm71, %v70
    %s74 = scalar_lea.vmem [#allocation0], 129
    %75 = vst.msk [vmem:[%s74] ss:$16 sm:$0xc] %vm71, %v70
    %s76 = scalar_lea.vmem [#allocation0], 129
    %77 = vst.msk [vmem:[%s76] ss:$16 sm:$0x30] %vm71, %v70
    %s78 = scalar_lea.vmem [#allocation0], 129
    %79 = vst.msk [vmem:[%s78] ss:$16 sm:$0xc0] %vm71, %v70
    %s80 = scalar_lea.vmem %s0, 16
    %v81 = vld.sshfl [vmem:[%s80] sm:$0xff pattern:$0xba983210]
    %82 = vrot.lane.b32.xlu0 %v81, 123
    %v83 = vpop.permute.xlu0 %82
    %vm84 = vcmask 39936
    %s85 = scalar_lea.vmem [#allocation0], 257
    %86 = vst.msk [vmem:[%s85] ss:$16 sm:$0x3] %vm84, %v83
    %s87 = scalar_lea.vmem [#allocation0], 257
    %88 = vst.msk [vmem:[%s87] ss:$16 sm:$0xc] %vm84, %v83
    %s89 = scalar_lea.vmem [#allocation0], 257
    %90 = vst.msk [vmem:[%s89] ss:$16 sm:$0x30] %vm84, %v83
    %s91 = scalar_lea.vmem [#allocation0], 257
    %92 = vst.msk [vmem:[%s91] ss:$16 sm:$0xc0] %vm84, %v83
    %s93 = scalar_lea.vmem %s0, 28
    %v94 = vld [vmem:[%s93] sm:$0xff]
    %95 = vrot.lane.b32.xlu0 %v94, 123
    %v96 = vpop.permute.xlu0 %95
    %vm97 = vcmask 39936
    %s98 = scalar_lea.vmem [#allocation0], 385
    %99 = vst.msk [vmem:[%s98] ss:$16 sm:$0x3] %vm97, %v96
    %s100 = scalar_lea.vmem [#allocation0], 385
    %101 = vst.msk [vmem:[%s100] ss:$16 sm:$0xc] %vm97, %v96
    %s102 = scalar_lea.vmem [#allocation0], 385
    %103 = vst.msk [vmem:[%s102] ss:$16 sm:$0x30] %vm97, %v96
    %s104 = scalar_lea.vmem [#allocation0], 385
    %105 = vst.msk [vmem:[%s104] ss:$16 sm:$0xc0] %vm97, %v96
    %s106 = scalar_lea.vmem %s0, 36
    %v107 = vld [vmem:[%s106] sm:$0xff]
    %108 = vrot.lane.b32.xlu0 %v107, 123
    %v109 = vpop.permute.xlu0 %108
    %vm110 = vcmask 39936
    %s111 = scalar_lea.vmem [#allocation0], 513
    %112 = vst.msk [vmem:[%s111] ss:$16 sm:$0x3] %vm110, %v109
    %s113 = scalar_lea.vmem [#allocation0], 513
    %114 = vst.msk [vmem:[%s113] ss:$16 sm:$0xc] %vm110, %v109
    %s115 = scalar_lea.vmem [#allocation0], 513
    %116 = vst.msk [vmem:[%s115] ss:$16 sm:$0x30] %vm110, %v109
    %s117 = scalar_lea.vmem [#allocation0], 513
    %118 = vst.msk [vmem:[%s117] ss:$16 sm:$0xc0] %vm110, %v109
    %v119 = vld [vmem:[%s0] sm:$0xff]
    %120 = vrot.lane.b32.xlu0 %v119, 118
    %v121 = vpop.permute.xlu0 %120
    %vm122 = vcmask 39936
    %s123 = scalar_lea.vmem [#allocation0], 8
    %124 = vst.msk [vmem:[%s123] ss:$16 sm:$0x3] %vm122, %v121
    %s125 = scalar_lea.vmem [#allocation0], 8
    %126 = vst.msk [vmem:[%s125] ss:$16 sm:$0xc] %vm122, %v121
    %s127 = scalar_lea.vmem [#allocation0], 8
    %128 = vst.msk [vmem:[%s127] ss:$16 sm:$0x30] %vm122, %v121
    %s129 = scalar_lea.vmem [#allocation0], 8
    %130 = vst.msk [vmem:[%s129] ss:$16 sm:$0xc0] %vm122, %v121
    %s131 = scalar_lea.vmem %s0, 8
    %v132 = vld [vmem:[%s131] sm:$0xff]
    %133 = vrot.lane.b32.xlu0 %v132, 118
    %v134 = vpop.permute.xlu0 %133
    %vm135 = vcmask 39936
    %s136 = scalar_lea.vmem [#allocation0], 136
    %137 = vst.msk [vmem:[%s136] ss:$16 sm:$0x3] %vm135, %v134
    %s138 = scalar_lea.vmem [#allocation0], 136
    %139 = vst.msk [vmem:[%s138] ss:$16 sm:$0xc] %vm135, %v134
    %s140 = scalar_lea.vmem [#allocation0], 136
    %141 = vst.msk [vmem:[%s140] ss:$16 sm:$0x30] %vm135, %v134
    %s142 = scalar_lea.vmem [#allocation0], 136
    %143 = vst.msk [vmem:[%s142] ss:$16 sm:$0xc0] %vm135, %v134
    %s144 = scalar_lea.vmem %s0, 16
    %v145 = vld.sshfl [vmem:[%s144] sm:$0xff pattern:$0xba983210]
    %146 = vrot.lane.b32.xlu0 %v145, 118
    %v147 = vpop.permute.xlu0 %146
    %vm148 = vcmask 39936
    %s149 = scalar_lea.vmem [#allocation0], 264
    %150 = vst.msk [vmem:[%s149] ss:$16 sm:$0x3] %vm148, %v147
    %s151 = scalar_lea.vmem [#allocation0], 264
    %152 = vst.msk [vmem:[%s151] ss:$16 sm:$0xc] %vm148, %v147
    %s153 = scalar_lea.vmem [#allocation0], 264
    %154 = vst.msk [vmem:[%s153] ss:$16 sm:$0x30] %vm148, %v147
    %s155 = scalar_lea.vmem [#allocation0], 264
    %156 = vst.msk [vmem:[%s155] ss:$16 sm:$0xc0] %vm148, %v147
    %s157 = scalar_lea.vmem %s0, 28
    %v158 = vld [vmem:[%s157] sm:$0xff]
    %159 = vrot.lane.b32.xlu0 %v158, 118
    %v160 = vpop.permute.xlu0 %159
    %vm161 = vcmask 39936
    %s162 = scalar_lea.vmem [#allocation0], 392
    %163 = vst.msk [vmem:[%s162] ss:$16 sm:$0x3] %vm161, %v160
    %s164 = scalar_lea.vmem [#allocation0], 392
    %165 = vst.msk [vmem:[%s164] ss:$16 sm:$0xc] %vm161, %v160
    %s166 = scalar_lea.vmem [#allocation0], 392
    %167 = vst.msk [vmem:[%s166] ss:$16 sm:$0x30] %vm161, %v160
    %s168 = scalar_lea.vmem [#allocation0], 392
    %169 = vst.msk [vmem:[%s168] ss:$16 sm:$0xc0] %vm161, %v160
    %s170 = scalar_lea.vmem %s0, 36
    %v171 = vld [vmem:[%s170] sm:$0xff]
    %172 = vrot.lane.b32.xlu0 %v171, 118
    %v173 = vpop.permute.xlu0 %172
    %vm174 = vcmask 39936
    %s175 = scalar_lea.vmem [#allocation0], 520
    %176 = vst.msk [vmem:[%s175] ss:$16 sm:$0x3] %vm174, %v173
    %s177 = scalar_lea.vmem [#allocation0], 520
    %178 = vst.msk [vmem:[%s177] ss:$16 sm:$0xc] %vm174, %v173
    %s179 = scalar_lea.vmem [#allocation0], 520
    %180 = vst.msk [vmem:[%s179] ss:$16 sm:$0x30] %vm174, %v173
    %s181 = scalar_lea.vmem [#allocation0], 520
    %182 = vst.msk [vmem:[%s181] ss:$16 sm:$0xc0] %vm174, %v173
    %v183 = vld [vmem:[%s0] sm:$0xff]
    %184 = vrot.lane.b32.xlu0 %v183, 113
    %v185 = vpop.permute.xlu0 %184
    %vm186 = vcmask 39936
    %s187 = scalar_lea.vmem [#allocation0], 9
    %188 = vst.msk [vmem:[%s187] ss:$16 sm:$0x3] %vm186, %v185
    %s189 = scalar_lea.vmem [#allocation0], 9
    %190 = vst.msk [vmem:[%s189] ss:$16 sm:$0xc] %vm186, %v185
    %s191 = scalar_lea.vmem [#allocation0], 9
    %192 = vst.msk [vmem:[%s191] ss:$16 sm:$0x30] %vm186, %v185
    %s193 = scalar_lea.vmem [#allocation0], 9
    %194 = vst.msk [vmem:[%s193] ss:$16 sm:$0xc0] %vm186, %v185
    %s195 = scalar_lea.vmem %s0, 8
    %v196 = vld [vmem:[%s195] sm:$0xff]
    %197 = vrot.lane.b32.xlu0 %v196, 113
    %v198 = vpop.permute.xlu0 %197
    %vm199 = vcmask 39936
    %s200 = scalar_lea.vmem [#allocation0], 137
    %201 = vst.msk [vmem:[%s200] ss:$16 sm:$0x3] %vm199, %v198
    %s202 = scalar_lea.vmem [#allocation0], 137
    %203 = vst.msk [vmem:[%s202] ss:$16 sm:$0xc] %vm199, %v198
    %s204 = scalar_lea.vmem [#allocation0], 137
    %205 = vst.msk [vmem:[%s204] ss:$16 sm:$0x30] %vm199, %v198
    %s206 = scalar_lea.vmem [#allocation0], 137
    %207 = vst.msk [vmem:[%s206] ss:$16 sm:$0xc0] %vm199, %v198
    %s208 = scalar_lea.vmem %s0, 16
    %v209 = vld.sshfl [vmem:[%s208] sm:$0xff pattern:$0xba983210]
    %210 = vrot.lane.b32.xlu0 %v209, 113
    %v211 = vpop.permute.xlu0 %210
    %vm212 = vcmask 39936
    %s213 = scalar_lea.vmem [#allocation0], 265
    %214 = vst.msk [vmem:[%s213] ss:$16 sm:$0x3] %vm212, %v211
    %s215 = scalar_lea.vmem [#allocation0], 265
    %216 = vst.msk [vmem:[%s215] ss:$16 sm:$0xc] %vm212, %v211
    %s217 = scalar_lea.vmem [#allocation0], 265
    %218 = vst.msk [vmem:[%s217] ss:$16 sm:$0x30] %vm212, %v211
    %s219 = scalar_lea.vmem [#allocation0], 265
    %220 = vst.msk [vmem:[%s219] ss:$16 sm:$0xc0] %vm212, %v211
    %s221 = scalar_lea.vmem %s0, 28
    %v222 = vld [vmem:[%s221] sm:$0xff]
    %223 = vrot.lane.b32.xlu0 %v222, 113
    %v224 = vpop.permute.xlu0 %223
    %vm225 = vcmask 39936
    %s226 = scalar_lea.vmem [#allocation0], 393
    %227 = vst.msk [vmem:[%s226] ss:$16 sm:$0x3] %vm225, %v224
    %s228 = scalar_lea.vmem [#allocation0], 393
    %229 = vst.msk [vmem:[%s228] ss:$16 sm:$0xc] %vm225, %v224
    %s230 = scalar_lea.vmem [#allocation0], 393
    %231 = vst.msk [vmem:[%s230] ss:$16 sm:$0x30] %vm225, %v224
    %s232 = scalar_lea.vmem [#allocation0], 393
    %233 = vst.msk [vmem:[%s232] ss:$16 sm:$0xc0] %vm225, %v224
    %s234 = scalar_lea.vmem %s0, 36
    %v235 = vld [vmem:[%s234] sm:$0xff]
    %236 = vrot.lane.b32.xlu0 %v235, 113
    %v237 = vpop.permute.xlu0 %236
    %vm238 = vcmask 39936
    %s239 = scalar_lea.vmem [#allocation0], 521
    %240 = vst.msk [vmem:[%s239] ss:$16 sm:$0x3] %vm238, %v237
    %s241 = scalar_lea.vmem [#allocation0], 521
    %242 = vst.msk [vmem:[%s241] ss:$16 sm:$0xc] %vm238, %v237
    %s243 = scalar_lea.vmem [#allocation0], 521
    %244 = vst.msk [vmem:[%s243] ss:$16 sm:$0x30] %vm238, %v237
    %s245 = scalar_lea.vmem [#allocation0], 521
    %246 = vst.msk [vmem:[%s245] ss:$16 sm:$0xc0] %vm238, %v237
    %s248 = sshllo.u32 0, 2
    %v250 = vld [vmem:[#allocation0] sm:%s248]
    %s251 = sshllo.u32 0, 2
    %252 = vst [vmem:[%s1] sm:%s251] %v250
    %s253 = scalar_lea.vmem [#allocation0], 8
    %v254 = vld [vmem:[%s253] sm:%s248]
    %s255 = sshllo.u32 0, 2
    %s256 = scalar_lea.vmem %s1, 2
    %257 = vst [vmem:[%s256] sm:%s255] %v254
    %s258 = scalar_lea.vmem [#allocation0], 16
    %v259 = vld [vmem:[%s258] sm:%s248]
    %s260 = sshllo.u32 0, 2
    %s261 = smul.addr 2, 2
    %s262 = scalar_lea.vmem %s1, %s261
    %263 = vst [vmem:[%s262] sm:%s260] %v259
    %s264 = scalar_lea.vmem [#allocation0], 24
    %v265 = vld [vmem:[%s264] sm:%s248]
    %s266 = sshllo.u32 0, 2
    %s267 = smul.addr 2, 3
    %s268 = scalar_lea.vmem %s1, %s267
    %269 = vst [vmem:[%s268] sm:%s266] %v265
    %s270 = scalar_lea.vmem [#allocation0], 32
    %v271 = vld [vmem:[%s270] sm:%s248]
    %s272 = sshllo.u32 0, 2
    %s273 = smul.addr 2, 4
    %s274 = scalar_lea.vmem %s1, %s273
    %275 = vst [vmem:[%s274] sm:%s272] %v271
    %s276 = scalar_lea.vmem [#allocation0], 40
    %v277 = vld [vmem:[%s276] sm:%s248]
    %s278 = sshllo.u32 0, 2
    %s279 = smul.addr 2, 5
    %s280 = scalar_lea.vmem %s1, %s279
    %281 = vst [vmem:[%s280] sm:%s278] %v277
    %s282 = scalar_lea.vmem [#allocation0], 48
    %v283 = vld [vmem:[%s282] sm:%s248]
    %s284 = sshllo.u32 0, 2
    %s285 = smul.addr 2, 6
    %s286 = scalar_lea.vmem %s1, %s285
    %287 = vst [vmem:[%s286] sm:%s284] %v283
    %s288 = scalar_lea.vmem [#allocation0], 56
    %v289 = vld [vmem:[%s288] sm:%s248]
    %s290 = sshllo.u32 0, 2
    %s291 = smul.addr 2, 7
    %s292 = scalar_lea.vmem %s1, %s291
    %293 = vst [vmem:[%s292] sm:%s290] %v289
    %s294 = scalar_lea.vmem [#allocation0], 64
    %v295 = vld [vmem:[%s294] sm:%s248]
    %s296 = sshllo.u32 0, 2
    %s297 = smul.addr 2, 8
    %s298 = scalar_lea.vmem %s1, %s297
    %299 = vst [vmem:[%s298] sm:%s296] %v295
    %s300 = scalar_lea.vmem [#allocation0], 72
    %v301 = vld [vmem:[%s300] sm:%s248]
    %s302 = sshllo.u32 0, 2
    %s303 = smul.addr 2, 9
    %s304 = scalar_lea.vmem %s1, %s303
    %305 = vst [vmem:[%s304] sm:%s302] %v301
    %s306 = scalar_lea.vmem [#allocation0], 80
    %v307 = vld [vmem:[%s306] sm:%s248]
    %s308 = sshllo.u32 0, 2
    %s309 = smul.addr 2, 10
    %s310 = scalar_lea.vmem %s1, %s309
    %311 = vst [vmem:[%s310] sm:%s308] %v307
    %s312 = scalar_lea.vmem [#allocation0], 88
    %v313 = vld [vmem:[%s312] sm:%s248]
    %s314 = sshllo.u32 0, 2
    %s315 = smul.addr 2, 11
    %s316 = scalar_lea.vmem %s1, %s315
    %317 = vst [vmem:[%s316] sm:%s314] %v313
    %s318 = scalar_lea.vmem [#allocation0], 96
    %v319 = vld [vmem:[%s318] sm:%s248]
    %s320 = sshllo.u32 0, 2
    %s321 = smul.addr 2, 12
    %s322 = scalar_lea.vmem %s1, %s321
    %323 = vst [vmem:[%s322] sm:%s320] %v319
    %s324 = scalar_lea.vmem [#allocation0], 104
    %v325 = vld [vmem:[%s324] sm:%s248]
    %s326 = sshllo.u32 0, 2
    %s327 = smul.addr 2, 13
    %s328 = scalar_lea.vmem %s1, %s327
    %329 = vst [vmem:[%s328] sm:%s326] %v325
    %s330 = scalar_lea.vmem [#allocation0], 112
    %v331 = vld [vmem:[%s330] sm:%s248]
    %s332 = sshllo.u32 0, 2
    %s333 = smul.addr 2, 14
    %s334 = scalar_lea.vmem %s1, %s333
    %335 = vst [vmem:[%s334] sm:%s332] %v331
    %s336 = scalar_lea.vmem [#allocation0], 120
    %v337 = vld [vmem:[%s336] sm:%s248]
    %s338 = sshllo.u32 0, 2
    %s339 = smul.addr 2, 15
    %s340 = scalar_lea.vmem %s1, %s339
    %341 = vst [vmem:[%s340] sm:%s338] %v337
    %s342 = scalar_lea.vmem [#allocation0], 128
    %v343 = vld [vmem:[%s342] sm:%s248]
    %s344 = sshllo.u32 0, 2
    %s345 = smul.addr 2, 16
    %s346 = scalar_lea.vmem %s1, %s345
    %347 = vst [vmem:[%s346] sm:%s344] %v343
    %s348 = scalar_lea.vmem [#allocation0], 136
    %v349 = vld [vmem:[%s348] sm:%s248]
    %s350 = sshllo.u32 0, 2
    %s351 = smul.addr 2, 17
    %s352 = scalar_lea.vmem %s1, %s351
    %353 = vst [vmem:[%s352] sm:%s350] %v349
    %s354 = scalar_lea.vmem [#allocation0], 144
    %v355 = vld [vmem:[%s354] sm:%s248]
    %s356 = sshllo.u32 0, 2
    %s357 = smul.addr 2, 18
    %s358 = scalar_lea.vmem %s1, %s357
    %359 = vst [vmem:[%s358] sm:%s356] %v355
    %s360 = scalar_lea.vmem [#allocation0], 152
    %v361 = vld [vmem:[%s360] sm:%s248]
    %s362 = sshllo.u32 0, 2
    %s363 = smul.addr 2, 19
    %s364 = scalar_lea.vmem %s1, %s363
    %365 = vst [vmem:[%s364] sm:%s362] %v361
    %s366 = scalar_lea.vmem [#allocation0], 160
    %v367 = vld [vmem:[%s366] sm:%s248]
    %s368 = sshllo.u32 0, 2
    %s369 = smul.addr 2, 20
    %s370 = scalar_lea.vmem %s1, %s369
    %371 = vst [vmem:[%s370] sm:%s368] %v367
    %s372 = scalar_lea.vmem [#allocation0], 168
    %v373 = vld [vmem:[%s372] sm:%s248]
    %s374 = sshllo.u32 0, 2
    %s375 = smul.addr 2, 21
    %s376 = scalar_lea.vmem %s1, %s375
    %377 = vst [vmem:[%s376] sm:%s374] %v373
    %s378 = scalar_lea.vmem [#allocation0], 176
    %v379 = vld [vmem:[%s378] sm:%s248]
    %s380 = sshllo.u32 0, 2
    %s381 = smul.addr 2, 22
    %s382 = scalar_lea.vmem %s1, %s381
    %383 = vst [vmem:[%s382] sm:%s380] %v379
    %s384 = scalar_lea.vmem [#allocation0], 184
    %v385 = vld [vmem:[%s384] sm:%s248]
    %s386 = sshllo.u32 0, 2
    %s387 = smul.addr 2, 23
    %s388 = scalar_lea.vmem %s1, %s387
    %389 = vst [vmem:[%s388] sm:%s386] %v385
    %s390 = scalar_lea.vmem [#allocation0], 192
    %v391 = vld [vmem:[%s390] sm:%s248]
    %s392 = sshllo.u32 0, 2
    %s393 = smul.addr 2, 24
    %s394 = scalar_lea.vmem %s1, %s393
    %395 = vst [vmem:[%s394] sm:%s392] %v391
    %s396 = scalar_lea.vmem [#allocation0], 200
    %v397 = vld [vmem:[%s396] sm:%s248]
    %s398 = sshllo.u32 0, 2
    %s399 = smul.addr 2, 25
    %s400 = scalar_lea.vmem %s1, %s399
    %401 = vst [vmem:[%s400] sm:%s398] %v397
    %s402 = scalar_lea.vmem [#allocation0], 208
    %v403 = vld [vmem:[%s402] sm:%s248]
    %s404 = sshllo.u32 0, 2
    %s405 = smul.addr 2, 26
    %s406 = scalar_lea.vmem %s1, %s405
    %407 = vst [vmem:[%s406] sm:%s404] %v403
    %s408 = scalar_lea.vmem [#allocation0], 216
    %v409 = vld [vmem:[%s408] sm:%s248]
    %s410 = sshllo.u32 0, 2
    %s411 = smul.addr 2, 27
    %s412 = scalar_lea.vmem %s1, %s411
    %413 = vst [vmem:[%s412] sm:%s410] %v409
    %s414 = scalar_lea.vmem [#allocation0], 224
    %v415 = vld [vmem:[%s414] sm:%s248]
    %s416 = sshllo.u32 0, 2
    %s417 = smul.addr 2, 28
    %s418 = scalar_lea.vmem %s1, %s417
    %419 = vst [vmem:[%s418] sm:%s416] %v415
    %s420 = scalar_lea.vmem [#allocation0], 232
    %v421 = vld [vmem:[%s420] sm:%s248]
    %s422 = sshllo.u32 0, 2
    %s423 = smul.addr 2, 29
    %s424 = scalar_lea.vmem %s1, %s423
    %425 = vst [vmem:[%s424] sm:%s422] %v421
    %s426 = scalar_lea.vmem [#allocation0], 240
    %v427 = vld [vmem:[%s426] sm:%s248]
    %s428 = sshllo.u32 0, 2
    %s429 = smul.addr 2, 30
    %s430 = scalar_lea.vmem %s1, %s429
    %431 = vst [vmem:[%s430] sm:%s428] %v427
    %s432 = scalar_lea.vmem [#allocation0], 248
    %v433 = vld [vmem:[%s432] sm:%s248]
    %s434 = sshllo.u32 0, 2
    %s435 = smul.addr 2, 31
    %s436 = scalar_lea.vmem %s1, %s435
    %437 = vst [vmem:[%s436] sm:%s434] %v433
    %s438 = scalar_lea.vmem [#allocation0], 256
    %v439 = vld [vmem:[%s438] sm:%s248]
    %s440 = sshllo.u32 0, 2
    %s441 = smul.addr 2, 32
    %s442 = scalar_lea.vmem %s1, %s441
    %443 = vst [vmem:[%s442] sm:%s440] %v439
    %s444 = scalar_lea.vmem [#allocation0], 264
    %v445 = vld [vmem:[%s444] sm:%s248]
    %s446 = sshllo.u32 0, 2
    %s447 = smul.addr 2, 33
    %s448 = scalar_lea.vmem %s1, %s447
    %449 = vst [vmem:[%s448] sm:%s446] %v445
    %s450 = scalar_lea.vmem [#allocation0], 272
    %v451 = vld [vmem:[%s450] sm:%s248]
    %s452 = sshllo.u32 0, 2
    %s453 = smul.addr 2, 34
    %s454 = scalar_lea.vmem %s1, %s453
    %455 = vst [vmem:[%s454] sm:%s452] %v451
    %s456 = scalar_lea.vmem [#allocation0], 280
    %v457 = vld [vmem:[%s456] sm:%s248]
    %s458 = sshllo.u32 0, 2
    %s459 = smul.addr 2, 35
    %s460 = scalar_lea.vmem %s1, %s459
    %461 = vst [vmem:[%s460] sm:%s458] %v457
    %s462 = scalar_lea.vmem [#allocation0], 288
    %v463 = vld [vmem:[%s462] sm:%s248]
    %s464 = sshllo.u32 0, 2
    %s465 = smul.addr 2, 36
    %s466 = scalar_lea.vmem %s1, %s465
    %467 = vst [vmem:[%s466] sm:%s464] %v463
    %s468 = scalar_lea.vmem [#allocation0], 296
    %v469 = vld [vmem:[%s468] sm:%s248]
    %s470 = sshllo.u32 0, 2
    %s471 = smul.addr 2, 37
    %s472 = scalar_lea.vmem %s1, %s471
    %473 = vst [vmem:[%s472] sm:%s470] %v469
    %s474 = scalar_lea.vmem [#allocation0], 304
    %v475 = vld [vmem:[%s474] sm:%s248]
    %s476 = sshllo.u32 0, 2
    %s477 = smul.addr 2, 38
    %s478 = scalar_lea.vmem %s1, %s477
    %479 = vst [vmem:[%s478] sm:%s476] %v475
    %s480 = scalar_lea.vmem [#allocation0], 312
    %v481 = vld [vmem:[%s480] sm:%s248]
    %s482 = sshllo.u32 0, 2
    %s483 = smul.addr 2, 39
    %s484 = scalar_lea.vmem %s1, %s483
    %485 = vst [vmem:[%s484] sm:%s482] %v481
    %s486 = scalar_lea.vmem [#allocation0], 320
    %v487 = vld [vmem:[%s486] sm:%s248]
    %s488 = sshllo.u32 0, 2
    %s489 = smul.addr 2, 40
    %s490 = scalar_lea.vmem %s1, %s489
    %491 = vst [vmem:[%s490] sm:%s488] %v487
    %s492 = scalar_lea.vmem [#allocation0], 328
    %v493 = vld [vmem:[%s492] sm:%s248]
    %s494 = sshllo.u32 0, 2
    %s495 = smul.addr 2, 41
    %s496 = scalar_lea.vmem %s1, %s495
    %497 = vst [vmem:[%s496] sm:%s494] %v493
    %s498 = scalar_lea.vmem [#allocation0], 336
    %v499 = vld [vmem:[%s498] sm:%s248]
    %s500 = sshllo.u32 0, 2
    %s501 = smul.addr 2, 42
    %s502 = scalar_lea.vmem %s1, %s501
    %503 = vst [vmem:[%s502] sm:%s500] %v499
    %s504 = scalar_lea.vmem [#allocation0], 344
    %v505 = vld [vmem:[%s504] sm:%s248]
    %s506 = sshllo.u32 0, 2
    %s507 = smul.addr 2, 43
    %s508 = scalar_lea.vmem %s1, %s507
    %509 = vst [vmem:[%s508] sm:%s506] %v505
    %s510 = scalar_lea.vmem [#allocation0], 352
    %v511 = vld [vmem:[%s510] sm:%s248]
    %s512 = sshllo.u32 0, 2
    %s513 = smul.addr 2, 44
    %s514 = scalar_lea.vmem %s1, %s513
    %515 = vst [vmem:[%s514] sm:%s512] %v511
    %s516 = scalar_lea.vmem [#allocation0], 360
    %v517 = vld [vmem:[%s516] sm:%s248]
    %s518 = sshllo.u32 0, 2
    %s519 = smul.addr 2, 45
    %s520 = scalar_lea.vmem %s1, %s519
    %521 = vst [vmem:[%s520] sm:%s518] %v517
    %s522 = scalar_lea.vmem [#allocation0], 368
    %v523 = vld [vmem:[%s522] sm:%s248]
    %s524 = sshllo.u32 0, 2
    %s525 = smul.addr 2, 46
    %s526 = scalar_lea.vmem %s1, %s525
    %527 = vst [vmem:[%s526] sm:%s524] %v523
    %s528 = scalar_lea.vmem [#allocation0], 376
    %v529 = vld [vmem:[%s528] sm:%s248]
    %s530 = sshllo.u32 0, 2
    %s531 = smul.addr 2, 47
    %s532 = scalar_lea.vmem %s1, %s531
    %533 = vst [vmem:[%s532] sm:%s530] %v529
    %s534 = scalar_lea.vmem [#allocation0], 384
    %v535 = vld [vmem:[%s534] sm:%s248]
    %s536 = sshllo.u32 0, 2
    %s537 = smul.addr 2, 48
    %s538 = scalar_lea.vmem %s1, %s537
    %539 = vst [vmem:[%s538] sm:%s536] %v535
    %s540 = scalar_lea.vmem [#allocation0], 392
    %v541 = vld [vmem:[%s540] sm:%s248]
    %s542 = sshllo.u32 0, 2
    %s543 = smul.addr 2, 49
    %s544 = scalar_lea.vmem %s1, %s543
    %545 = vst [vmem:[%s544] sm:%s542] %v541
    %s546 = scalar_lea.vmem [#allocation0], 400
    %v547 = vld [vmem:[%s546] sm:%s248]
    %s548 = sshllo.u32 0, 2
    %s549 = smul.addr 2, 50
    %s550 = scalar_lea.vmem %s1, %s549
    %551 = vst [vmem:[%s550] sm:%s548] %v547
    %s552 = scalar_lea.vmem [#allocation0], 408
    %v553 = vld [vmem:[%s552] sm:%s248]
    %s554 = sshllo.u32 0, 2
    %s555 = smul.addr 2, 51
    %s556 = scalar_lea.vmem %s1, %s555
    %557 = vst [vmem:[%s556] sm:%s554] %v553
    %s558 = scalar_lea.vmem [#allocation0], 416
    %v559 = vld [vmem:[%s558] sm:%s248]
    %s560 = sshllo.u32 0, 2
    %s561 = smul.addr 2, 52
    %s562 = scalar_lea.vmem %s1, %s561
    %563 = vst [vmem:[%s562] sm:%s560] %v559
    %s564 = scalar_lea.vmem [#allocation0], 424
    %v565 = vld [vmem:[%s564] sm:%s248]
    %s566 = sshllo.u32 0, 2
    %s567 = smul.addr 2, 53
    %s568 = scalar_lea.vmem %s1, %s567
    %569 = vst [vmem:[%s568] sm:%s566] %v565
    %s570 = scalar_lea.vmem [#allocation0], 432
    %v571 = vld [vmem:[%s570] sm:%s248]
    %s572 = sshllo.u32 0, 2
    %s573 = smul.addr 2, 54
    %s574 = scalar_lea.vmem %s1, %s573
    %575 = vst [vmem:[%s574] sm:%s572] %v571
    %s576 = scalar_lea.vmem [#allocation0], 440
    %v577 = vld [vmem:[%s576] sm:%s248]
    %s578 = sshllo.u32 0, 2
    %s579 = smul.addr 2, 55
    %s580 = scalar_lea.vmem %s1, %s579
    %581 = vst [vmem:[%s580] sm:%s578] %v577
    %s582 = scalar_lea.vmem [#allocation0], 448
    %v583 = vld [vmem:[%s582] sm:%s248]
    %s584 = sshllo.u32 0, 2
    %s585 = smul.addr 2, 56
    %s586 = scalar_lea.vmem %s1, %s585
    %587 = vst [vmem:[%s586] sm:%s584] %v583
    %s588 = scalar_lea.vmem [#allocation0], 456
    %v589 = vld [vmem:[%s588] sm:%s248]
    %s590 = sshllo.u32 0, 2
    %s591 = smul.addr 2, 57
    %s592 = scalar_lea.vmem %s1, %s591
    %593 = vst [vmem:[%s592] sm:%s590] %v589
    %s594 = scalar_lea.vmem [#allocation0], 464
    %v595 = vld [vmem:[%s594] sm:%s248]
    %s596 = sshllo.u32 0, 2
    %s597 = smul.addr 2, 58
    %s598 = scalar_lea.vmem %s1, %s597
    %599 = vst [vmem:[%s598] sm:%s596] %v595
    %s600 = scalar_lea.vmem [#allocation0], 472
    %v601 = vld [vmem:[%s600] sm:%s248]
    %s602 = sshllo.u32 0, 2
    %s603 = smul.addr 2, 59
    %s604 = scalar_lea.vmem %s1, %s603
    %605 = vst [vmem:[%s604] sm:%s602] %v601
    %s606 = scalar_lea.vmem [#allocation0], 480
    %v607 = vld [vmem:[%s606] sm:%s248]
    %s608 = sshllo.u32 0, 2
    %s609 = smul.addr 2, 60
    %s610 = scalar_lea.vmem %s1, %s609
    %611 = vst [vmem:[%s610] sm:%s608] %v607
    %s612 = scalar_lea.vmem [#allocation0], 488
    %v613 = vld [vmem:[%s612] sm:%s248]
    %s614 = sshllo.u32 0, 2
    %s615 = smul.addr 2, 61
    %s616 = scalar_lea.vmem %s1, %s615
    %617 = vst [vmem:[%s616] sm:%s614] %v613
    %s618 = scalar_lea.vmem [#allocation0], 496
    %v619 = vld [vmem:[%s618] sm:%s248]
    %s620 = sshllo.u32 0, 2
    %s621 = smul.addr 2, 62
    %s622 = scalar_lea.vmem %s1, %s621
    %623 = vst [vmem:[%s622] sm:%s620] %v619
    %s624 = scalar_lea.vmem [#allocation0], 504
    %v625 = vld [vmem:[%s624] sm:%s248]
    %s626 = sshllo.u32 0, 2
    %s627 = smul.addr 2, 63
    %s628 = scalar_lea.vmem %s1, %s627
    %629 = vst [vmem:[%s628] sm:%s626] %v625
    %s630 = scalar_lea.vmem [#allocation0], 512
    %v631 = vld [vmem:[%s630] sm:%s248]
    %s632 = sshllo.u32 0, 2
    %s633 = smul.addr 2, 64
    %s634 = scalar_lea.vmem %s1, %s633
    %635 = vst [vmem:[%s634] sm:%s632] %v631
    %s636 = scalar_lea.vmem [#allocation0], 520
    %v637 = vld [vmem:[%s636] sm:%s248]
    %s638 = sshllo.u32 0, 2
    %s639 = smul.addr 2, 65
    %s640 = scalar_lea.vmem %s1, %s639
    %641 = vst [vmem:[%s640] sm:%s638] %v637
    %s642 = scalar_lea.vmem [#allocation0], 528
    %v643 = vld [vmem:[%s642] sm:%s248]
    %s644 = sshllo.u32 0, 2
    %s645 = smul.addr 2, 66
    %s646 = scalar_lea.vmem %s1, %s645
    %647 = vst [vmem:[%s646] sm:%s644] %v643
    %s648 = scalar_lea.vmem [#allocation0], 536
    %v649 = vld [vmem:[%s648] sm:%s248]
    %s650 = sshllo.u32 0, 2
    %s651 = smul.addr 2, 67
    %s652 = scalar_lea.vmem %s1, %s651
    %653 = vst [vmem:[%s652] sm:%s650] %v649
    %s654 = scalar_lea.vmem [#allocation0], 544
    %v655 = vld [vmem:[%s654] sm:%s248]
    %s656 = sshllo.u32 0, 2
    %s657 = smul.addr 2, 68
    %s658 = scalar_lea.vmem %s1, %s657
    %659 = vst [vmem:[%s658] sm:%s656] %v655
    %s660 = scalar_lea.vmem [#allocation0], 552
    %v661 = vld [vmem:[%s660] sm:%s248]
    %s662 = sshllo.u32 0, 2
    %s663 = smul.addr 2, 69
    %s664 = scalar_lea.vmem %s1, %s663
    %665 = vst [vmem:[%s664] sm:%s662] %v661
    %s666 = scalar_lea.vmem [#allocation0], 560
    %v667 = vld [vmem:[%s666] sm:%s248]
    %s668 = sshllo.u32 0, 2
    %s669 = smul.addr 2, 70
    %s670 = scalar_lea.vmem %s1, %s669
    %671 = vst [vmem:[%s670] sm:%s668] %v667
    %s672 = scalar_lea.vmem [#allocation0], 568
    %v673 = vld [vmem:[%s672] sm:%s248]
    %s674 = sshllo.u32 0, 2
    %s675 = smul.addr 2, 71
    %s676 = scalar_lea.vmem %s1, %s675
    %677 = vst [vmem:[%s676] sm:%s674] %v673
    %s678 = scalar_lea.vmem [#allocation0], 576
    %v679 = vld [vmem:[%s678] sm:%s248]
    %s680 = sshllo.u32 0, 2
    %s681 = smul.addr 2, 72
    %s682 = scalar_lea.vmem %s1, %s681
    %683 = vst [vmem:[%s682] sm:%s680] %v679
    %s684 = scalar_lea.vmem [#allocation0], 584
    %v685 = vld [vmem:[%s684] sm:%s248]
    %s686 = sshllo.u32 0, 2
    %s687 = smul.addr 2, 73
    %s688 = scalar_lea.vmem %s1, %s687
    %689 = vst [vmem:[%s688] sm:%s686] %v685
    %s690 = scalar_lea.vmem [#allocation0], 592
    %v691 = vld [vmem:[%s690] sm:%s248]
    %s692 = sshllo.u32 0, 2
    %s693 = smul.addr 2, 74
    %s694 = scalar_lea.vmem %s1, %s693
    %695 = vst [vmem:[%s694] sm:%s692] %v691
    %s696 = scalar_lea.vmem [#allocation0], 600
    %v697 = vld [vmem:[%s696] sm:%s248]
    %s698 = sshllo.u32 0, 2
    %s699 = smul.addr 2, 75
    %s700 = scalar_lea.vmem %s1, %s699
    %701 = vst [vmem:[%s700] sm:%s698] %v697
    %s702 = scalar_lea.vmem [#allocation0], 608
    %v703 = vld [vmem:[%s702] sm:%s248]
    %s704 = sshllo.u32 0, 2
    %s705 = smul.addr 2, 76
    %s706 = scalar_lea.vmem %s1, %s705
    %707 = vst [vmem:[%s706] sm:%s704] %v703
    %s708 = scalar_lea.vmem [#allocation0], 616
    %v709 = vld [vmem:[%s708] sm:%s248]
    %s710 = sshllo.u32 0, 2
    %s711 = smul.addr 2, 77
    %s712 = scalar_lea.vmem %s1, %s711
    %713 = vst [vmem:[%s712] sm:%s710] %v709
    %s714 = scalar_lea.vmem [#allocation0], 624
    %v715 = vld [vmem:[%s714] sm:%s248]
    %s716 = sshllo.u32 0, 2
    %s717 = smul.addr 2, 78
    %s718 = scalar_lea.vmem %s1, %s717
    %719 = vst [vmem:[%s718] sm:%s716] %v715
    %s720 = scalar_lea.vmem [#allocation0], 632
    %v721 = vld [vmem:[%s720] sm:%s248]
    %s722 = sshllo.u32 0, 2
    %s723 = smul.addr 2, 79
    %s724 = scalar_lea.vmem %s1, %s723
    %725 = vst [vmem:[%s724] sm:%s722] %v721

// kernel: mnist_forward.1
$region0: #{mnist_forward.1}
  #allocation0 [shape = 'u32[]', space=smem, size = 0x4, offset = 0x4, fixed_abs, tag = 'smem constant byte address 0x4 - core index']
  #allocation1 [shape = 'u32[144,128]{1,0:T(1,128)}', space=vmem, size = 0x12000, scoped, tag = 'internal scratch']
  %s0 = inlined_call_operand.vmem [shape: f32[32,25], index: 0, kind: input, shape index: {}]
  %s1 = inlined_call_operand.vmem [shape: f32[25,8], index: 1, kind: input, shape index: {}]
  %s2 = inlined_call_operand.vmem [shape: f32[1,8], index: 2, kind: input, shape index: {}]
  %s3 = inlined_call_operand.vmem [shape: f32[4,8,10], index: 3, kind: input, shape index: {}]
  %s4 = inlined_call_operand.vmem [shape: f32[1,10], index: 4, kind: input, shape index: {}]
  %s5 = inlined_call_operand.hbm [shape: f32[2,10], index: 5, kind: output, shape index: {}]
  %s6 = sld [smem:[#allocation0]]
  $region30: #{mnist_forward.1} parent=0
    _
  %s8 = ssub.s32 1, %s6
  %s9 = scalar_select 0, %s8, %s6
  $region1: #{mnist_forward.1} parent=0
    #allocation2 [shape = 'u8[1024]{0}', space=vmem, size = 0x400, scoped, tag = 'output window, operand 0, single buffered']
    #allocation3 [shape = 's32[1]{0}', space=sflag, size = 0x4, scoped, tag = 'scoped memory for mnist_forward.1']
    %10 = vsyncpa [#allocation3], 0
    // Predicated region
    $region2: #{mnist_forward.1} parent=1 // pred_check
      _
    $region3: #{mnist_forward.1} parent=1 // pred_check_branch
      %12 = sbr.rel (0) target = $region5
    $region4: #{mnist_forward.1} parent=1 // pred_region
      _
    $region5: #{mnist_forward.1} parent=1 // pred_fallthru
      _
    // Predicated region
    $region6: #{mnist_forward.1} parent=1 // pred_check
      _
    $region7: #{mnist_forward.1} parent=1 // pred_check_branch
      %14 = sbr.rel (0) target = $region9
    $region8: #{mnist_forward.1} parent=1 // pred_region
      _
    $region9: #{mnist_forward.1} parent=1 // pred_fallthru
      _
    // Predicated region
    $region10: #{mnist_forward.1} parent=1 // pred_check
      _
    $region11: #{mnist_forward.1} parent=1 // pred_check_branch
      %16 = sbr.rel (0) target = $region13
    $region12: #{mnist_forward.1} parent=1 // pred_region
      _
    $region13: #{mnist_forward.1} parent=1 // pred_fallthru
      _
    // Predicated region
    $region14: #{mnist_forward.1} parent=1 // pred_check
      _
    $region15: #{mnist_forward.1} parent=1 // pred_check_branch
      %18 = sbr.rel (0) target = $region17
    $region16: #{mnist_forward.1} parent=1 // pred_region
      _
    $region17: #{mnist_forward.1} parent=1 // pred_fallthru
      _
    // Predicated region
    $region18: #{mnist_forward.1} parent=1 // pred_check
      _
    $region19: #{mnist_forward.1} parent=1 // pred_check_branch
      %20 = sbr.rel (0) target = $region21
    $region20: #{mnist_forward.1} parent=1 // pred_region
      _
    $region21: #{mnist_forward.1} parent=1 // pred_fallthru
      _
    %v21 = vld [vmem:[%s0] sm:$0xff]
    %v22 = vld [vmem:[%s0 + $0x8] sm:$0xff]
    %v23 = vld [vmem:[%s0 + $0x10] sm:$0xff]
    %v24 = vld [vmem:[%s0 + $0x18] sm:$0xff]
    %v25 = vld [vmem:[%s1] sm:$0xff]
    %v26 = vld [vmem:[%s1 + $0x8] sm:$0xff]
    %v27 = vld [vmem:[%s1 + $0x10] sm:$0xff]
    %v28 = vld [vmem:[%s1 + $0x18] sm:$0x1]
    %v29 = vld [vmem:[%s2] sm:$0x1]
    %v31 = vlaneseq
    %v32 = vshrl.u32 %v31, 7
    %v33 = vsub.s32 0, %v32
    %v34 = vrot.slane %v29, %v33
    %vm36 = vcmask 203776
    %v38 = vsel %vm36, %v21, 0
    %v41 = vsel %vm36, %v22, 0
    %v44 = vsel %vm36, %v23, 0
    %v47 = vsel %vm36, %v24, 0
    %vm49 = vcmask 1040384
    %v51 = vsel %vm49, %v28, 0
    %53 = vmatprep.subr.mxu0 0.0
    %54 = vmatpush1.msra.mxu0 %v25
    %55 = vmatprep.subr.mxu0 0.0
    %56 = vmatpush1.msra.mxu0 %v26
    %57 = vmatprep.subr.mxu0 0.0
    %58 = vmatpush1.msra.mxu0 %v27
    %59 = vmatprep.subr.mxu0 0.0
    %60 = vmatpush1.msra.mxu0 %v51
    %61 = vmatprep.subr.mxu0 0.0
    %62 = vmatpush1.msra.mxu0 0.0
    %63 = vmatprep.subr.mxu0 0.0
    %64 = vmatpush1.msra.mxu0 0.0
    %65 = vmatprep.subr.mxu0 0.0
    %66 = vmatpush1.msra.mxu0 0.0
    %67 = vmatprep.subr.mxu0 0.0
    %68 = vmatpush1.msra.mxu0 0.0
    %69 = vmatprep.subr.mxu0 0.0
    %70 = vmatpush1.msra.mxu0 0.0
    %71 = vmatprep.subr.mxu0 0.0
    %72 = vmatpush1.msra.mxu0 0.0
    %73 = vmatprep.subr.mxu0 0.0
    %74 = vmatpush1.msra.mxu0 0.0
    %75 = vmatprep.subr.mxu0 0.0
    %76 = vmatpush1.msra.mxu0 0.0
    %77 = vmatprep.subr.mxu0 0.0
    %78 = vmatpush1.msra.mxu0 0.0
    %79 = vmatprep.subr.mxu0 0.0
    %80 = vmatpush1.msra.mxu0 0.0
    %81 = vmatprep.subr.mxu0 0.0
    %82 = vmatpush1.msra.mxu0 0.0
    %83 = vmatprep.subr.mxu0 0.0
    %84 = vmatpush1.msra.mxu0 0.0
    %85 = vmatprep.subr.mxu0 0.0
    %86 = vmatpush1.msra.mxu0 0.0
    %87 = vmatprep.subr.mxu0 0.0
    %88 = vmatpush1.msra.mxu0 0.0
    %89 = vmatprep.subr.mxu0 0.0
    %90 = vmatpush1.msra.mxu0 0.0
    %91 = vmatprep.subr.mxu0 0.0
    %92 = vmatpush1.msra.mxu0 0.0
    %93 = vmatprep.subr.mxu0 0.0
    %94 = vmatpush1.msra.mxu0 0.0
    %95 = vmatprep.subr.mxu0 0.0
    %96 = vmatpush1.msra.mxu0 0.0
    %97 = vmatprep.subr.mxu0 0.0
    %98 = vmatpush1.msra.mxu0 0.0
    %99 = vmatprep.subr.mxu0 0.0
    %100 = vmatpush1.msra.mxu0 0.0
    %101 = vmatprep.subr.mxu0 0.0
    %102 = vmatpush1.msra.mxu0 0.0
    %103 = vmatprep.subr.mxu0 0.0
    %104 = vmatpush1.msra.mxu0 0.0
    %105 = vmatprep.subr.mxu0 0.0
    %106 = vmatpush1.msra.mxu0 0.0
    %107 = vmatprep.subr.mxu0 0.0
    %108 = vmatpush1.msra.mxu0 0.0
    %109 = vmatprep.subr.mxu0 0.0
    %110 = vmatpush1.msra.mxu0 0.0
    %111 = vmatprep.subr.mxu0 0.0
    %112 = vmatpush1.msra.mxu0 0.0
    %113 = vmatprep.subr.mxu0 0.0
    %114 = vmatpush1.msra.mxu0 0.0
    %115 = vmatprep.subr.mxu0 0.0
    %116 = vmatpush1.msra.mxu0 0.0
    %117 = vmatprep.mubr.f32.mxu0 0.0
    %118 = vmatmul.mubr.f32.gmra.mrb[0].mxu0 %v38
    %v119 = vpop.f32.mrb[0].mxu0
    %v120 = vadd.f32 %v34, %v119
    %v121 = vpop.f32.mrb[0].mxu0
    %122 = vmatprep.mubr.f32.mxu0 0.0
    %123 = vmatmul.mubr.f32.gmra.mrb[0].mxu0 %v41
    %v124 = vpop.f32.mrb[0].mxu0
    %v125 = vadd.f32 %v34, %v124
    %v126 = vpop.f32.mrb[0].mxu0
    %127 = vmatprep.mubr.f32.mxu0 0.0
    %128 = vmatmul.mubr.f32.gmra.mrb[0].mxu0 %v44
    %v129 = vpop.f32.mrb[0].mxu0
    %v130 = vadd.f32 %v34, %v129
    %v131 = vpop.f32.mrb[0].mxu0
    %132 = vmatprep.mubr.f32.mxu0 0.0
    %133 = vmatmul.mubr.f32.gmra.mrb[0].mxu0 %v47
    %v134 = vpop.f32.mrb[0].mxu0
    %v135 = vadd.f32 %v34, %v134
    %v136 = vpop.f32.mrb[0].mxu0
    %137 = vdwg.mxu0
    %v138 = vmax.f32 %v120, 0.0
    %v139 = vmax.f32 %v125, 0.0
    %v140 = vmax.f32 %v130, 0.0
    %v141 = vmax.f32 %v135, 0.0
    %v142 = vmax.f32 %v138, %v139
    %v143 = vmax.f32 %v140, %v141
    %v144 = vmax.f32 %v142, %v143
    %v145 = vld [vmem:[%s4] sm:$0x1]
    %v146 = vld [vmem:[%s3] sm:$0xff]
    %vm147 = vcmask 64512
    %v149 = vsel %vm147, %v144, 0
    %151 = vmatprep.subr.mxu0 0.0
    %152 = vmatpush1.msra.mxu0 %v146
    %153 = vmatprep.subr.mxu0 0.0
    %154 = vmatpush1.msra.mxu0 0.0
    %155 = vmatprep.subr.mxu0 0.0
    %156 = vmatpush1.msra.mxu0 0.0
    %157 = vmatprep.subr.mxu0 0.0
    %158 = vmatpush1.msra.mxu0 0.0
    %159 = vmatprep.subr.mxu0 0.0
    %160 = vmatpush1.msra.mxu0 0.0
    %161 = vmatprep.subr.mxu0 0.0
    %162 = vmatpush1.msra.mxu0 0.0
    %163 = vmatprep.subr.mxu0 0.0
    %164 = vmatpush1.msra.mxu0 0.0
    %165 = vmatprep.subr.mxu0 0.0
    %166 = vmatpush1.msra.mxu0 0.0
    %167 = vmatprep.subr.mxu0 0.0
    %168 = vmatpush1.msra.mxu0 0.0
    %169 = vmatprep.subr.mxu0 0.0
    %170 = vmatpush1.msra.mxu0 0.0
    %171 = vmatprep.subr.mxu0 0.0
    %172 = vmatpush1.msra.mxu0 0.0
    %173 = vmatprep.subr.mxu0 0.0
    %174 = vmatpush1.msra.mxu0 0.0
    %175 = vmatprep.subr.mxu0 0.0
    %176 = vmatpush1.msra.mxu0 0.0
    %177 = vmatprep.subr.mxu0 0.0
    %178 = vmatpush1.msra.mxu0 0.0
    %179 = vmatprep.subr.mxu0 0.0
    %180 = vmatpush1.msra.mxu0 0.0
    %181 = vmatprep.subr.mxu0 0.0
    %182 = vmatpush1.msra.mxu0 0.0
    %183 = vmatprep.subr.mxu0 0.0
    %184 = vmatpush1.msra.mxu0 0.0
    %185 = vmatprep.subr.mxu0 0.0
    %186 = vmatpush1.msra.mxu0 0.0
    %187 = vmatprep.subr.mxu0 0.0
    %188 = vmatpush1.msra.mxu0 0.0
    %189 = vmatprep.subr.mxu0 0.0
    %190 = vmatpush1.msra.mxu0 0.0
    %191 = vmatprep.subr.mxu0 0.0
    %192 = vmatpush1.msra.mxu0 0.0
    %193 = vmatprep.subr.mxu0 0.0
    %194 = vmatpush1.msra.mxu0 0.0
    %195 = vmatprep.subr.mxu0 0.0
    %196 = vmatpush1.msra.mxu0 0.0
    %197 = vmatprep.subr.mxu0 0.0
    %198 = vmatpush1.msra.mxu0 0.0
    %199 = vmatprep.subr.mxu0 0.0
    %200 = vmatpush1.msra.mxu0 0.0
    %201 = vmatprep.subr.mxu0 0.0
    %202 = vmatpush1.msra.mxu0 0.0
    %203 = vmatprep.subr.mxu0 0.0
    %204 = vmatpush1.msra.mxu0 0.0
    %205 = vmatprep.subr.mxu0 0.0
    %206 = vmatpush1.msra.mxu0 0.0
    %207 = vmatprep.subr.mxu0 0.0
    %208 = vmatpush1.msra.mxu0 0.0
    %209 = vmatprep.subr.mxu0 0.0
    %210 = vmatpush1.msra.mxu0 0.0
    %211 = vmatprep.subr.mxu0 0.0
    %212 = vmatpush1.msra.mxu0 0.0
    %213 = vmatprep.subr.mxu0 0.0
    %214 = vmatpush1.msra.mxu0 0.0
    %215 = vmatprep.mubr.f32.mxu0 0.0
    %216 = vmatmul.mubr.f32.gmra.mrb[0].mxu0 %v149
    %v217 = vpop.f32.mrb[0].mxu0
    %v218 = vadd.f32 0.0, %v217
    %v219 = vpop.f32.mrb[0].mxu0
    %220 = vdwg.mxu0
    %v222 = vlaneseq
    %v223 = vshrl.u32 %v222, 7
    %v224 = vsub.s32 0, %v223
    %v225 = vrot.slane %v145, %v224
    %v227 = vadd.f32 %v225, %v218
    %s228 = scalar_lea.vmem %s3, 8
    %v229 = vld [vmem:[%s228] sm:$0xff]
    %v230 = vrot.slane %v144, 2
    %v231 = vsel %vm147, %v230, 0
    %233 = vmatprep.subr.mxu0 0.0
    %234 = vmatpush1.msra.mxu0 %v229
    %235 = vmatprep.subr.mxu0 0.0
    %236 = vmatpush1.msra.mxu0 0.0
    %237 = vmatprep.subr.mxu0 0.0
    %238 = vmatpush1.msra.mxu0 0.0
    %239 = vmatprep.subr.mxu0 0.0
    %240 = vmatpush1.msra.mxu0 0.0
    %241 = vmatprep.subr.mxu0 0.0
    %242 = vmatpush1.msra.mxu0 0.0
    %243 = vmatprep.subr.mxu0 0.0
    %244 = vmatpush1.msra.mxu0 0.0
    %245 = vmatprep.subr.mxu0 0.0
    %246 = vmatpush1.msra.mxu0 0.0
    %247 = vmatprep.subr.mxu0 0.0
    %248 = vmatpush1.msra.mxu0 0.0
    %249 = vmatprep.subr.mxu0 0.0
    %250 = vmatpush1.msra.mxu0 0.0
    %251 = vmatprep.subr.mxu0 0.0
    %252 = vmatpush1.msra.mxu0 0.0
    %253 = vmatprep.subr.mxu0 0.0
    %254 = vmatpush1.msra.mxu0 0.0
    %255 = vmatprep.subr.mxu0 0.0
    %256 = vmatpush1.msra.mxu0 0.0
    %257 = vmatprep.subr.mxu0 0.0
    %258 = vmatpush1.msra.mxu0 0.0
    %259 = vmatprep.subr.mxu0 0.0
    %260 = vmatpush1.msra.mxu0 0.0
    %261 = vmatprep.subr.mxu0 0.0
    %262 = vmatpush1.msra.mxu0 0.0
    %263 = vmatprep.subr.mxu0 0.0
    %264 = vmatpush1.msra.mxu0 0.0
    %265 = vmatprep.subr.mxu0 0.0
    %266 = vmatpush1.msra.mxu0 0.0
    %267 = vmatprep.subr.mxu0 0.0
    %268 = vmatpush1.msra.mxu0 0.0
    %269 = vmatprep.subr.mxu0 0.0
    %270 = vmatpush1.msra.mxu0 0.0
    %271 = vmatprep.subr.mxu0 0.0
    %272 = vmatpush1.msra.mxu0 0.0
    %273 = vmatprep.subr.mxu0 0.0
    %274 = vmatpush1.msra.mxu0 0.0
    %275 = vmatprep.subr.mxu0 0.0
    %276 = vmatpush1.msra.mxu0 0.0
    %277 = vmatprep.subr.mxu0 0.0
    %278 = vmatpush1.msra.mxu0 0.0
    %279 = vmatprep.subr.mxu0 0.0
    %280 = vmatpush1.msra.mxu0 0.0
    %281 = vmatprep.subr.mxu0 0.0
    %282 = vmatpush1.msra.mxu0 0.0
    %283 = vmatprep.subr.mxu0 0.0
    %284 = vmatpush1.msra.mxu0 0.0
    %285 = vmatprep.subr.mxu0 0.0
    %286 = vmatpush1.msra.mxu0 0.0
    %287 = vmatprep.subr.mxu0 0.0
    %288 = vmatpush1.msra.mxu0 0.0
    %289 = vmatprep.subr.mxu0 0.0
    %290 = vmatpush1.msra.mxu0 0.0
    %291 = vmatprep.subr.mxu0 0.0
    %292 = vmatpush1.msra.mxu0 0.0
    %293 = vmatprep.subr.mxu0 0.0
    %294 = vmatpush1.msra.mxu0 0.0
    %295 = vmatprep.subr.mxu0 0.0
    %296 = vmatpush1.msra.mxu0 0.0
    %297 = vmatprep.mubr.f32.mxu0 0.0
    %298 = vmatmul.mubr.f32.gmra.mrb[0].mxu0 %v231
    %v299 = vpop.f32.mrb[0].mxu0
    %v300 = vadd.f32 0.0, %v299
    %v301 = vpop.f32.mrb[0].mxu0
    %302 = vdwg.mxu0
    %v303 = vadd.f32 %v227, %v300
    %s304 = scalar_lea.vmem %s3, 16
    %v305 = vld [vmem:[%s304] sm:$0xff]
    %v306 = vrot.slane %v144, 4
    %v307 = vsel %vm147, %v306, 0
    %309 = vmatprep.subr.mxu0 0.0
    %310 = vmatpush1.msra.mxu0 %v305
    %311 = vmatprep.subr.mxu0 0.0
    %312 = vmatpush1.msra.mxu0 0.0
    %313 = vmatprep.subr.mxu0 0.0
    %314 = vmatpush1.msra.mxu0 0.0
    %315 = vmatprep.subr.mxu0 0.0
    %316 = vmatpush1.msra.mxu0 0.0
    %317 = vmatprep.subr.mxu0 0.0
    %318 = vmatpush1.msra.mxu0 0.0
    %319 = vmatprep.subr.mxu0 0.0
    %320 = vmatpush1.msra.mxu0 0.0
    %321 = vmatprep.subr.mxu0 0.0
    %322 = vmatpush1.msra.mxu0 0.0
    %323 = vmatprep.subr.mxu0 0.0
    %324 = vmatpush1.msra.mxu0 0.0
    %325 = vmatprep.subr.mxu0 0.0
    %326 = vmatpush1.msra.mxu0 0.0
    %327 = vmatprep.subr.mxu0 0.0
    %328 = vmatpush1.msra.mxu0 0.0
    %329 = vmatprep.subr.mxu0 0.0
    %330 = vmatpush1.msra.mxu0 0.0
    %331 = vmatprep.subr.mxu0 0.0
    %332 = vmatpush1.msra.mxu0 0.0
    %333 = vmatprep.subr.mxu0 0.0
    %334 = vmatpush1.msra.mxu0 0.0
    %335 = vmatprep.subr.mxu0 0.0
    %336 = vmatpush1.msra.mxu0 0.0
    %337 = vmatprep.subr.mxu0 0.0
    %338 = vmatpush1.msra.mxu0 0.0
    %339 = vmatprep.subr.mxu0 0.0
    %340 = vmatpush1.msra.mxu0 0.0
    %341 = vmatprep.subr.mxu0 0.0
    %342 = vmatpush1.msra.mxu0 0.0
    %343 = vmatprep.subr.mxu0 0.0
    %344 = vmatpush1.msra.mxu0 0.0
    %345 = vmatprep.subr.mxu0 0.0
    %346 = vmatpush1.msra.mxu0 0.0
    %347 = vmatprep.subr.mxu0 0.0
    %348 = vmatpush1.msra.mxu0 0.0
    %349 = vmatprep.subr.mxu0 0.0
    %350 = vmatpush1.msra.mxu0 0.0
    %351 = vmatprep.subr.mxu0 0.0
    %352 = vmatpush1.msra.mxu0 0.0
    %353 = vmatprep.subr.mxu0 0.0
    %354 = vmatpush1.msra.mxu0 0.0
    %355 = vmatprep.subr.mxu0 0.0
    %356 = vmatpush1.msra.mxu0 0.0
    %357 = vmatprep.subr.mxu0 0.0
    %358 = vmatpush1.msra.mxu0 0.0
    %359 = vmatprep.subr.mxu0 0.0
    %360 = vmatpush1.msra.mxu0 0.0
    %361 = vmatprep.subr.mxu0 0.0
    %362 = vmatpush1.msra.mxu0 0.0
    %363 = vmatprep.subr.mxu0 0.0
    %364 = vmatpush1.msra.mxu0 0.0
    %365 = vmatprep.subr.mxu0 0.0
    %366 = vmatpush1.msra.mxu0 0.0
    %367 = vmatprep.subr.mxu0 0.0
    %368 = vmatpush1.msra.mxu0 0.0
    %369 = vmatprep.subr.mxu0 0.0
    %370 = vmatpush1.msra.mxu0 0.0
    %371 = vmatprep.subr.mxu0 0.0
    %372 = vmatpush1.msra.mxu0 0.0
    %373 = vmatprep.mubr.f32.mxu0 0.0
    %374 = vmatmul.mubr.f32.gmra.mrb[0].mxu0 %v307
    %v375 = vpop.f32.mrb[0].mxu0
    %v376 = vadd.f32 0.0, %v375
    %v377 = vpop.f32.mrb[0].mxu0
    %378 = vdwg.mxu0
    %v379 = vadd.f32 %v303, %v376
    %s380 = scalar_lea.vmem %s3, 24
    %v381 = vld [vmem:[%s380] sm:$0xff]
    %v382 = vrot.slane %v144, 6
    %v383 = vsel %vm147, %v382, 0
    %385 = vmatprep.subr.mxu0 0.0
    %386 = vmatpush1.msra.mxu0 %v381
    %387 = vmatprep.subr.mxu0 0.0
    %388 = vmatpush1.msra.mxu0 0.0
    %389 = vmatprep.subr.mxu0 0.0
    %390 = vmatpush1.msra.mxu0 0.0
    %391 = vmatprep.subr.mxu0 0.0
    %392 = vmatpush1.msra.mxu0 0.0
    %393 = vmatprep.subr.mxu0 0.0
    %394 = vmatpush1.msra.mxu0 0.0
    %395 = vmatprep.subr.mxu0 0.0
    %396 = vmatpush1.msra.mxu0 0.0
    %397 = vmatprep.subr.mxu0 0.0
    %398 = vmatpush1.msra.mxu0 0.0
    %399 = vmatprep.subr.mxu0 0.0
    %400 = vmatpush1.msra.mxu0 0.0
    %401 = vmatprep.subr.mxu0 0.0
    %402 = vmatpush1.msra.mxu0 0.0
    %403 = vmatprep.subr.mxu0 0.0
    %404 = vmatpush1.msra.mxu0 0.0
    %405 = vmatprep.subr.mxu0 0.0
    %406 = vmatpush1.msra.mxu0 0.0
    %407 = vmatprep.subr.mxu0 0.0
    %408 = vmatpush1.msra.mxu0 0.0
    %409 = vmatprep.subr.mxu0 0.0
    %410 = vmatpush1.msra.mxu0 0.0
    %411 = vmatprep.subr.mxu0 0.0
    %412 = vmatpush1.msra.mxu0 0.0
    %413 = vmatprep.subr.mxu0 0.0
    %414 = vmatpush1.msra.mxu0 0.0
    %415 = vmatprep.subr.mxu0 0.0
    %416 = vmatpush1.msra.mxu0 0.0
    %417 = vmatprep.subr.mxu0 0.0
    %418 = vmatpush1.msra.mxu0 0.0
    %419 = vmatprep.subr.mxu0 0.0
    %420 = vmatpush1.msra.mxu0 0.0
    %421 = vmatprep.subr.mxu0 0.0
    %422 = vmatpush1.msra.mxu0 0.0
    %423 = vmatprep.subr.mxu0 0.0
    %424 = vmatpush1.msra.mxu0 0.0
    %425 = vmatprep.subr.mxu0 0.0
    %426 = vmatpush1.msra.mxu0 0.0
    %427 = vmatprep.subr.mxu0 0.0
    %428 = vmatpush1.msra.mxu0 0.0
    %429 = vmatprep.subr.mxu0 0.0
    %430 = vmatpush1.msra.mxu0 0.0
    %431 = vmatprep.subr.mxu0 0.0
    %432 = vmatpush1.msra.mxu0 0.0
    %433 = vmatprep.subr.mxu0 0.0
    %434 = vmatpush1.msra.mxu0 0.0
    %435 = vmatprep.subr.mxu0 0.0
    %436 = vmatpush1.msra.mxu0 0.0
    %437 = vmatprep.subr.mxu0 0.0
    %438 = vmatpush1.msra.mxu0 0.0
    %439 = vmatprep.subr.mxu0 0.0
    %440 = vmatpush1.msra.mxu0 0.0
    %441 = vmatprep.subr.mxu0 0.0
    %442 = vmatpush1.msra.mxu0 0.0
    %443 = vmatprep.subr.mxu0 0.0
    %444 = vmatpush1.msra.mxu0 0.0
    %445 = vmatprep.subr.mxu0 0.0
    %446 = vmatpush1.msra.mxu0 0.0
    %447 = vmatprep.subr.mxu0 0.0
    %448 = vmatpush1.msra.mxu0 0.0
    %449 = vmatprep.mubr.f32.mxu0 0.0
    %450 = vmatmul.mubr.f32.gmra.mrb[0].mxu0 %v383
    %v451 = vpop.f32.mrb[0].mxu0
    %v452 = vadd.f32 0.0, %v451
    %v453 = vpop.f32.mrb[0].mxu0
    %454 = vdwg.mxu0
    %v455 = vadd.f32 %v379, %v452
    %vm456 = vcmask 74752
    %v457 = vsel %vm456, %v455, -inf
    %458 = vmax.xlane.f32.xlu0 %v457
    %v459 = vpop.xlane.xlu0 %458
    %v460 = vsub.f32 %v455, %v459
    %v461 = vmul.f32 %v460, 1.442695
    %v462 = vpow.pop %v461
    %v463 = vsel %vm456, %v462, 0.0
    %464 = vadd.xlane.f32.xlu0 %v463
    %v465 = vpop.xlane.xlu0 %464
    %v466 = vlog2.pop %v465
    %v467 = vmul.f32 %v466, 0.6931472
    %v468 = vsub.f32 %v460, %v467
    %469 = vst.msk [vmem:[#allocation2] sm:$0x3] %vm456, %v468
    // Predicated region
    $region22: #{mnist_forward.1} parent=1 // pred_check
      _
    $region23: #{mnist_forward.1} parent=1 // pred_check_branch
      %471 = sbr.rel (0) target = $region25
    $region24: #{mnist_forward.1} parent=1 // pred_region
      %s473 = ssub.s32 32, 32
      %474 = vsyncadd [#allocation3], %s473
      %s476 = sshll.u32 [#allocation2], 4
      %s477 = int_to_ptr.vmem [resolvable:$true] %s476
      %479 = dma.vmem_to_hbm [thread:$0]  %s477, 32, %s5, [#allocation3]
    $region25: #{mnist_forward.1} parent=1 // pred_fallthru
      _
    // Predicated region
    $region26: #{mnist_forward.1} parent=1 // pred_check
      _
    $region27: #{mnist_forward.1} parent=1 // pred_check_branch
      %481 = sbr.rel (0) target = $region29
    $region28: #{mnist_forward.1} parent=1 // pred_region
      %482 = dma.done [#allocation3], 32
    $region29: #{mnist_forward.1} parent=1 // pred_fallthru
      _
    %483 = vsyncpa [#allocation3], 1

</llo_original>
